<compile_context>
chip_gen: v7x
topology: tpu7x:2x2x1
jax: 0.10.0
libtpu: 0.0.40
codegen_flags: <defaults>
</compile_context>

<pallas_src>
import functools
import math

import jax
import jax.numpy as jnp
from jax import lax
from jax.experimental import pallas as pl
from jax.experimental.pallas import tpu as pltpu

# Finite stand-in for -inf used only as the accumulator init, so the first
# online-LSE rescale exp(m_prev - m_new) underflows cleanly to 0 (never NaN).
# NOTE: data values near float32 min (-3.4e38) would alias this init value;
# not a concern for realistic similarity scores.
_NEG_CAP = float(jnp.finfo(jnp.float32).min)


def _lse_partial_kernel(x_ref, out_ref, m_sc, s_sc, *, chunk_rows, n_chunks):
    """Per-split online logsumexp over full (tm, C) blocks, no masking.

    Accumulators are vreg-shaped (8, C) f32 in VMEM; the block is folded in
    chunk_rows-row chunks so live f32 temporaries stay a few hundred KiB.
    """
    i = pl.program_id(1)                      # row-tile (reduction) index

    @pl.when(i == 0)
    def _init():
        m_sc[...] = jnp.full_like(m_sc, _NEG_CAP)
        s_sc[...] = jnp.zeros_like(s_sc)

    C = x_ref.shape[1]
    groups = chunk_rows // 8

    def fold(j, carry):
        m_prev, s_prev = carry
        start = pl.multiple_of(j * chunk_rows, chunk_rows)
        # Upcast in-register; f32 reshape splits on the native (8,128) tile -> free.
        xc = x_ref[pl.ds(start, chunk_rows), :].astype(jnp.float32)   # (chunk_rows, C)
        xr = xc.reshape(groups, 8, C)
        c_max = jnp.max(xr, axis=0)                                   # (8, C) cross-vreg max
        m_new = jnp.maximum(m_prev, c_max)
        p = jnp.exp(xr - m_new[None])                                 # EUP
        s_new = s_prev * jnp.exp(m_prev - m_new) + jnp.sum(p, axis=0)
        return m_new, s_new

    m_fin, s_fin = lax.fori_loop(0, n_chunks, fold, (m_sc[...], s_sc[...]),
                                 unroll=min(n_chunks, 8))
    m_sc[...] = m_fin
    s_sc[...] = s_fin

    # Epilogue (once per split): the only cross-lane/sublane reduction.
    @pl.when(i == pl.num_programs(1) - 1)
    def _epilogue():
        m_vec = m_sc[...]
        M = jnp.max(m_vec, axis=(0, 1), keepdims=True)                            # (1, 1)
        tot = jnp.sum(s_sc[...] * jnp.exp(m_vec - M), axis=(0, 1), keepdims=True)
        lse = M + jnp.log(tot)
        out_ref[...] = jnp.broadcast_to(lse.reshape(1, 1, 1), out_ref.shape)


def _choose_tiles(R, C, itemsize, target_block_bytes, chunk_target_bytes, block_rows):
    """Pick (tm, chunk_rows, n_chunks) with tm = n_chunks * chunk_rows <= 8*(R//8)."""
    max_rows = (R // 8) * 8
    if max_rows < 8:
        return None
    # Chunk sized by f32 bytes (what actually lives in vregs/VMEM temporaries).
    chunk_rows = max(8, min(max_rows, (chunk_target_bytes // (C * 4)) // 8 * 8))
    if block_rows is not None:
        req = max(8, min(max_rows, (block_rows // 8) * 8))
        chunk_rows = min(chunk_rows, req)
        n_chunks = max(1, req // chunk_rows)
    else:
        # Block sized by *input* bytes only (bf16 reaches the same byte target).
        n_chunks = max(1, int(target_block_bytes) // (chunk_rows * C * itemsize))
    n_chunks = min(n_chunks, 16, max(1, max_rows // chunk_rows))
    tm = n_chunks * chunk_rows
    return tm, chunk_rows, n_chunks


def _logsumexp_2d(x2d, *, num_splits=1, target_block_bytes=4 * 1024 * 1024,
                  chunk_target_bytes=512 * 1024, block_rows=None):
    """logsumexp over all elements of a lane-dense 2-D array (C % 128 == 0)."""
    R, C = x2d.shape
    itemsize = jnp.dtype(x2d.dtype).itemsize

    tiles = _choose_tiles(R, C, itemsize, target_block_bytes, chunk_target_bytes,
                          block_rows)
    if tiles is None:
        return jax.nn.logsumexp(x2d.astype(jnp.float32))
    tm, chunk_rows, n_chunks = tiles

    nb = R // tm                              # full blocks only — never a partial block
    if nb == 0:
        return jax.nn.logsumexp(x2d.astype(jnp.float32))
    S = max(1, min(num_splits, nb))           # every split owns >=1 real block
    T = nb // S
    rows_covered = S * T * tm

    covered = rows_covered * C
    vmem_est = (2 * tm * C * itemsize          # double-buffered input block
                + 4 * chunk_rows * C * 4       # in-flight f32 chunk temporaries
                + 4 * 8 * C * 4                # (8, C) accumulators (m, s)
                + 2 * 8 * 128 * 4)             # output block
    vmem_limit = int(min(max(2 * vmem_est, 32 * 1024 * 1024), 48 * 1024 * 1024))

    kernel = functools.partial(_lse_partial_kernel,
                               chunk_rows=chunk_rows, n_chunks=n_chunks)

    partials = pl.pallas_call(
        kernel,
        out_shape=jax.ShapeDtypeStruct((S, 8, 128), jnp.float32),
        grid_spec=pltpu.PrefetchScalarGridSpec(
            num_scalar_prefetch=0,
            grid=(S, T),
            in_specs=[pl.BlockSpec((tm, C), lambda s, i: (s * T + i, 0))],
            out_specs=pl.BlockSpec((1, 8, 128), lambda s, i: (s, 0, 0)),
            scratch_shapes=[
                pltpu.VMEM((8, C), jnp.float32),   # running max
                pltpu.VMEM((8, C), jnp.float32),   # running sum(exp)
            ]),
        compiler_params=pltpu.CompilerParams(
            dimension_semantics=("parallel", "arbitrary"),
            vmem_limit_bytes=vmem_limit),
        cost_estimate=pl.CostEstimate(
            flops=4 * covered,
            transcendentals=covered,
            bytes_accessed=covered * itemsize + S * 8 * 128 * 4),
    )(x2d)

    lse = jax.nn.logsumexp(partials[:, 0, 0])   # combine O(S) partials

    if rows_covered < R:                        # leftover full rows -> tiny XLA reduce
        lse = jnp.logaddexp(lse, jax.nn.logsumexp(
            x2d[rows_covered:].astype(jnp.float32)))
    return lse


def _prepare_lane_dense(x, lane_width=512):
    """Return (main_2d_lane_dense_or_None, tail_1d_or_None). Reduction is over all
    elements, so layout is ours to choose; row-major reshape is copy-free."""
    n = x.size
    if x.ndim >= 2:
        C = x.shape[-1]
        if C >= 128 and C % 128 == 0:
            return x.reshape(-1, C), None       # already lane-dense, free reshape
    flat = x.reshape(-1)
    W = lane_width
    rows = n // W
    if rows == 0:
        return None, flat
    if n % W == 0:
        return flat.reshape(rows, W), None      # free reshape
    # Ragged case: small slice copy of the prefix + a tiny tail for the wrapper.
    return flat[: rows * W].reshape(rows, W), flat[rows * W:]


def momentum_baseline_forward(neg_similarity, log_moving_average, momentum_logit,
                              *, training=True, use_kernel=None, num_splits=1,
                              target_block_bytes=4 * 1024 * 1024, block_rows=None,
                              lane_width=512):
    """Functional MomentumBaseline.forward.

    Returns the updated log moving average (shape (1,), float32). The caller
    carries this value as the new buffer state (JAX has no in-place buffers).
    """
    if not training:
        return log_moving_average

    numel = neg_similarity.size
    if use_kernel is None:
        # For tiny inputs, kernel launch + pipeline setup dwarfs the work.
        use_kernel = numel >= (1 << 20)

    if use_kernel:
        main, tail = _prepare_lane_dense(neg_similarity, lane_width)
        if main is None:
            lse = jax.nn.logsumexp(tail.astype(jnp.float32))
        else:
            lse = _logsumexp_2d(main, num_splits=num_splits,
                                target_block_bytes=target_block_bytes,
                                block_rows=block_rows)
            if tail is not None and tail.size > 0:
                lse = jnp.logaddexp(lse, jax.nn.logsumexp(tail.astype(jnp.float32)))
    else:
        lse = jax.nn.logsumexp(neg_similarity.astype(jnp.float32))

    log_batch_average = lse - jnp.float32(math.log(numel))
    ml = momentum_logit.astype(jnp.float32).reshape(())
    log_ma = log_moving_average.astype(jnp.float32).reshape(())
    new = jnp.logaddexp(log_ma + jax.nn.log_sigmoid(ml),
                        log_batch_average + jax.nn.log_sigmoid(-ml))
    new = lax.stop_gradient(new)   # matches stop_gradient in the torch code
    # TODO(synk): the in-place buffer mutation (log_moving_average.data = ...) and the
    # custom LogMeanExp backward have no direct JAX equivalent here; the caller must
    # carry the returned value as the new buffer state (and add a custom_vjp for grads).
    return new.reshape(1)


def _reference(neg_similarity, log_moving_average, momentum_logit):
    x = neg_similarity.astype(jnp.float32)
    lme = jax.nn.logsumexp(x) - jnp.log(jnp.float32(x.size))
    ml = momentum_logit.astype(jnp.float32)[0]
    return jnp.logaddexp(log_moving_average.astype(jnp.float32) + jax.nn.log_sigmoid(ml),
                         lme + jax.nn.log_sigmoid(-ml))


if __name__ == "__main__":
    key = jax.random.PRNGKey(0)
    k1, k2 = jax.random.split(key)

    # Module buffers (deterministic init, matching __init__ with momentum=0.9).
    momentum = 0.9
    log_moving_average = jnp.zeros((1,), jnp.float32)
    momentum_logit = jnp.array([math.log(momentum / (1.0 - momentum))], jnp.float32)

    # Small similarity matrix; 520 rows -> multi-tile grid + leftover rows on the
    # wrapper side (no in-kernel masking anywhere).
    R, C = 520, 256
    neg_sim = jax.random.normal(k1, (R, C), jnp.float32) * 3.0
    ref = _reference(neg_sim, log_moving_average, momentum_logit)

    # 1) Forced-kernel path, explicit small tiles -> grid (1, 8), leftover rows tail.
    out = momentum_baseline_forward(neg_sim, log_moving_average, momentum_logit,
                                    training=True, use_kernel=True, block_rows=64)
    out = jax.block_until_ready(out)
    assert out.shape == (1,)
    assert jnp.allclose(out, ref, atol=1e-4, rtol=1e-4), (out, ref)

    # 2) Auto tile selection (large block sized by bytes, single grid step).
    out2 = momentum_baseline_forward(neg_sim, log_moving_average, momentum_logit,
                                     training=True, use_kernel=True)
    out2 = jax.block_until_ready(out2)
    assert jnp.allclose(out2, ref, atol=1e-4, rtol=1e-4), (out2, ref)

    # 3) bf16 input streams as bf16 and is upcast in-register inside the kernel.
    neg_bf16 = neg_sim.astype(jnp.bfloat16)
    ref3 = _reference(neg_bf16, log_moving_average, momentum_logit)
    out3 = momentum_baseline_forward(neg_bf16, log_moving_average, momentum_logit,
                                     training=True, use_kernel=True, block_rows=64)
    out3 = jax.block_until_ready(out3)
    assert jnp.allclose(out3, ref3, atol=1e-4, rtol=1e-4), (out3, ref3)

    # 4) Non-lane-dense last dim -> wrapper reshapes to width 512; sub-row tail;
    #    num_splits=2 with every split owning real blocks (no padding blocks).
    neg4 = jax.random.normal(k2, (1041, 100), jnp.float32) * 2.0
    ref4 = _reference(neg4, log_moving_average, momentum_logit)
    out4 = momentum_baseline_forward(neg4, log_moving_average, momentum_logit,
                                     training=True, use_kernel=True, block_rows=64,
                                     num_splits=2)
    out4 = jax.block_until_ready(out4)
    assert jnp.allclose(out4, ref4, atol=1e-4, rtol=1e-4), (out4, ref4)

    # 5) Eval mode returns the buffer unchanged.
    ev = momentum_baseline_forward(neg_sim, log_moving_average, momentum_logit,
                                   training=False)
    assert jnp.array_equal(ev, log_moving_average)

    print("KERNEL_OK")
</pallas_src>

<mosaic_0001>
module attributes {stable_mosaic.version = 11 : i64} {
  func.func @_lse_partial_kernel(%arg0: i32, %arg1: i32, %arg2: memref<64x256xf32, #tpu.memory_space<vmem>>, %arg3: memref<1x8x128xf32, #tpu.memory_space<vmem>>, %arg4: memref<8x256xf32, #tpu.memory_space<vmem>>, %arg5: memref<8x256xf32, #tpu.memory_space<vmem>>) attributes {dimension_semantics = [#tpu.dimension_semantics<parallel>, #tpu.dimension_semantics<arbitrary>], iteration_bounds = array<i64: 1, 8>, scalar_prefetch = 0 : i64, scratch_operands = 2 : i64, tpu.core_type = #tpu.core_type<tc>, window_params = [{transform_indices = @transform_0, window_bounds = array<i64: 64, 256>}, {transform_indices = @transform_1, window_bounds = array<i64: 1, 8, 128>}]} {
    %c0_i32 = arith.constant 0 : i32
    %0 = arith.cmpi eq, %arg1, %c0_i32 : i32
    %1 = arith.extui %0 : i1 to i32
    %c0_i32_0 = arith.constant 0 : i32
    %2 = arith.cmpi ne, %1, %c0_i32_0 : i32
    scf.if %2 {
      %cst_12 = arith.constant -3.40282347E+38 : f32
      %26 = vector.broadcast %cst_12 : f32 to vector<8x256xf32>
      %c0_13 = arith.constant 0 : index
      %c0_14 = arith.constant 0 : index
      %27 = vector.load %arg4[%c0_13, %c0_14] : memref<8x256xf32, #tpu.memory_space<vmem>>, vector<8x256xf32>
      tpu.vector_store %arg4[%c0_13, %c0_14], %26 {strides = array<i32>} : memref<8x256xf32, #tpu.memory_space<vmem>>, vector<8x256xf32>,
      %cst_15 = arith.constant 0.000000e+00 : f32
      %28 = vector.broadcast %cst_15 : f32 to vector<8x256xf32>
      %c0_16 = arith.constant 0 : index
      %c0_17 = arith.constant 0 : index
      %29 = vector.load %arg5[%c0_16, %c0_17] : memref<8x256xf32, #tpu.memory_space<vmem>>, vector<8x256xf32>
      tpu.vector_store %arg5[%c0_16, %c0_17], %28 {strides = array<i32>} : memref<8x256xf32, #tpu.memory_space<vmem>>, vector<8x256xf32>,
    } else {
    }
    %c0 = arith.constant 0 : index
    %c0_1 = arith.constant 0 : index
    %3 = vector.load %arg4[%c0, %c0_1] : memref<8x256xf32, #tpu.memory_space<vmem>>, vector<8x256xf32>
    %c0_2 = arith.constant 0 : index
    %c0_3 = arith.constant 0 : index
    %4 = vector.load %arg5[%c0_2, %c0_3] : memref<8x256xf32, #tpu.memory_space<vmem>>, vector<8x256xf32>
    %c0_i32_4 = arith.constant 0 : i32
    %c64_i32 = arith.constant 64 : i32
    %5 = arith.muli %c0_i32_4, %c64_i32 : i32
    %6 = tpu.assume_multiple %5, 64 : i32
    %7 = arith.index_cast %6 : i32 to index
    %c0_5 = arith.constant 0 : index
    %8 = vector.load %arg2[%7, %c0_5] : memref<64x256xf32, #tpu.memory_space<vmem>>, vector<64x256xf32>
    %9 = vector.shape_cast %8 : vector<64x256xf32> to vector<8x8x256xf32>
    %cst = arith.constant dense<0xFF800000> : vector<8x256xf32>
    %10 = vector.multi_reduction <maximumf>, %9, %cst [0] : vector<8x8x256xf32> to vector<8x256xf32>
    %11 = arith.maximumf %3, %10 : vector<8x256xf32>
    %12 = vector.shape_cast %11 : vector<8x256xf32> to vector<1x8x256xf32>
    %13 = vector.broadcast %12 : vector<1x8x256xf32> to vector<8x8x256xf32>
    %14 = arith.subf %9, %13 : vector<8x8x256xf32>
    %15 = math.exp %14 : vector<8x8x256xf32>
    %16 = arith.subf %3, %11 : vector<8x256xf32>
    %17 = math.exp %16 : vector<8x256xf32>
    %18 = arith.mulf %4, %17 : vector<8x256xf32>
    %cst_6 = arith.constant dense<0.000000e+00> : vector<8x256xf32>
    %19 = vector.multi_reduction <add>, %15, %cst_6 [0] : vector<8x8x256xf32> to vector<8x256xf32>
    %20 = arith.addf %18, %19 : vector<8x256xf32>
    %c1_i32 = arith.constant 1 : i32
    %c0_7 = arith.constant 0 : index
    %c0_8 = arith.constant 0 : index
    %21 = vector.load %arg4[%c0_7, %c0_8] : memref<8x256xf32, #tpu.memory_space<vmem>>, vector<8x256xf32>
    tpu.vector_store %arg4[%c0_7, %c0_8], %11 {strides = array<i32>} : memref<8x256xf32, #tpu.memory_space<vmem>>, vector<8x256xf32>,
    %c0_9 = arith.constant 0 : index
    %c0_10 = arith.constant 0 : index
    %22 = vector.load %arg5[%c0_9, %c0_10] : memref<8x256xf32, #tpu.memory_space<vmem>>, vector<8x256xf32>
    tpu.vector_store %arg5[%c0_9, %c0_10], %20 {strides = array<i32>} : memref<8x256xf32, #tpu.memory_space<vmem>>, vector<8x256xf32>,
    %c7_i32 = arith.constant 7 : i32
    %23 = arith.cmpi eq, %arg1, %c7_i32 : i32
    %24 = arith.extui %23 : i1 to i32
    %c0_i32_11 = arith.constant 0 : i32
    %25 = arith.cmpi ne, %24, %c0_i32_11 : i32
    scf.if %25 {
      %c0_12 = arith.constant 0 : index
      %c0_13 = arith.constant 0 : index
      %26 = vector.load %arg4[%c0_12, %c0_13] : memref<8x256xf32, #tpu.memory_space<vmem>>, vector<8x256xf32>
      %27 = vector.shape_cast %26 : vector<8x256xf32> to vector<1x8x256xf32>
      %cst_14 = arith.constant dense<0xFF800000> : vector<1xf32>
      %28 = vector.multi_reduction <maximumf>, %27, %cst_14 [1, 2] : vector<1x8x256xf32> to vector<1xf32>
      %29 = vector.shape_cast %28 : vector<1xf32> to vector<1x1x1xf32>
      %30 = vector.extract %29[0, 0, 0] : f32 from vector<1x1x1xf32>
      %31 = vector.broadcast %30 : f32 to vector<1x1xf32>
      %c0_15 = arith.constant 0 : index
      %c0_16 = arith.constant 0 : index
      %32 = vector.load %arg5[%c0_15, %c0_16] : memref<8x256xf32, #tpu.memory_space<vmem>>, vector<8x256xf32>
      %33 = vector.broadcast %31 : vector<1x1xf32> to vector<8x256xf32>
      %34 = arith.subf %26, %33 : vector<8x256xf32>
      %35 = math.exp %34 : vector<8x256xf32>
      %36 = arith.mulf %32, %35 : vector<8x256xf32>
      %37 = vector.shape_cast %36 : vector<8x256xf32> to vector<1x8x256xf32>
      %cst_17 = arith.constant dense<0.000000e+00> : vector<1xf32>
      %38 = vector.multi_reduction <add>, %37, %cst_17 [1, 2] : vector<1x8x256xf32> to vector<1xf32>
      %39 = vector.shape_cast %38 : vector<1xf32> to vector<1x1x1xf32>
      %40 = vector.extract %39[0, 0, 0] : f32 from vector<1x1x1xf32>
      %41 = vector.broadcast %40 : f32 to vector<1x1xf32>
      %42 = math.log %41 : vector<1x1xf32>
      %43 = arith.addf %31, %42 : vector<1x1xf32>
      %44 = vector.shape_cast %43 : vector<1x1xf32> to vector<1x1x1xf32>
      %45 = vector.shape_cast %44 : vector<1x1x1xf32> to vector<1x1x1xf32>
      %46 = vector.broadcast %45 : vector<1x1x1xf32> to vector<1x8x128xf32>
      %c0_18 = arith.constant 0 : index
      %c0_19 = arith.constant 0 : index
      %c0_20 = arith.constant 0 : index
      %47 = vector.load %arg3[%c0_18, %c0_19, %c0_20] : memref<1x8x128xf32, #tpu.memory_space<vmem>>, vector<1x8x128xf32>
      tpu.vector_store %arg3[%c0_18, %c0_19, %c0_20], %46 {strides = array<i32>} : memref<1x8x128xf32, #tpu.memory_space<vmem>>, vector<1x8x128xf32>,
    } else {
    }
    return
  }
  func.func @transform_0(%arg0: i32, %arg1: i32) -> (i32, i32) {
    %c8_i32 = arith.constant 8 : i32
    %0 = arith.muli %arg0, %c8_i32 : i32
    %1 = arith.addi %0, %arg1 : i32
    %c0_i32 = arith.constant 0 : i32
    %c0_i32_0 = arith.constant 0 : i32
    return %1, %c0_i32 : i32, i32
  }
  func.func @transform_1(%arg0: i32, %arg1: i32) -> (i32, i32, i32) {
    %c0_i32 = arith.constant 0 : i32
    %c0_i32_0 = arith.constant 0 : i32
    %c0_i32_1 = arith.constant 0 : i32
    return %arg0, %c0_i32, %c0_i32_0 : i32, i32, i32
  }
}

</mosaic_0001>

<llo_original>
// kernel: tpu_custom_call.1
$region0: #{tpu_custom_call.1}
  #allocation0 [shape = 'u32[]', space=smem, size = 0x4, offset = 0x4, fixed_abs, tag = 'smem constant byte address 0x4 - core index']
  #allocation1 [shape = 'u32[144,128]{1,0:T(1,128)}', space=vmem, size = 0x12000, scoped, tag = 'internal scratch']
  #allocation2 [shape = 'f32[8,256]{1,0:T(8,128)}', space=vmem, size = 0x2000, scoped, tag = 'scratch operand']
  #allocation3 [shape = 'f32[8,256]{1,0:T(8,128)}', space=vmem, size = 0x2000, scoped, tag = 'scratch operand']
  %s0 = inlined_call_operand.hbm [shape: f32[520,256], index: 0, kind: input, shape index: {}]
  %s1 = inlined_call_operand.hbm [shape: f32[1,8,128], index: 1, kind: output, shape index: {}]
  %s2 = sld [smem:[#allocation0]]
  $region49: #{tpu_custom_call.1} parent=0
    _
  %s4 = ssub.s32 1, %s2
  %s5 = scalar_select 0, %s4, %s2
  $region1: #{tpu_custom_call.1} parent=0
    #allocation4 [shape = 'u8[131072]{0}', space=vmem, size = 0x20000, scoped, tag = 'input window, operand 0']
    #allocation5 [shape = 's32[2]{0}', space=sflag, size = 0x8, scoped, tag = 'scoped memory for tpu_custom_call.1']
    #allocation6 [shape = 's32[2]{0}', space=sflag, size = 0x8, scoped, tag = 'scoped memory for tpu_custom_call.1']
    #allocation7 [shape = 'u8[4096]{0}', space=vmem, size = 0x1000, scoped, tag = 'output window, operand 0, single buffered']
    %6 = vsyncpa [#allocation5], 0
    %s7 = scalar_lea.sflag [#allocation5], 1
    %8 = vsyncpa %s7, 0
    %9 = vsyncpa [#allocation6], 0
    loop: start=0, step=1, limit=10
    $region2: #{tpu_custom_call.1} parent=1 // loop_pre_header
      _
    $region3: #{tpu_custom_call.1} parent=1 // loop_header
      %s11 = sphi 0, %s15
      %p12 = scmp.ge.s32.totalorder %s11, 10
      %s18 = sphi 0, %s30
      %s19 = sphi 0, %s26
      %s20 = sphi 0, %s18
      %s21 = sphi 0, %s19
      %s22 = sphi 0, %s20
      %s23 = sphi 0, %s21
      %s37 = sphi 0, %s39
      %s40 = sphi 0, %s37
      %s41 = sphi 0, %s40
      %s57 = sphi 0, %s41
      %s63 = sphi 0, %s65
      %s66 = sphi 0, %s63
      %s67 = sphi 0, %s66
      %s83 = sphi 0, %s67
    $region4: #{tpu_custom_call.1} parent=1 // loop_header_branch
      %14 = sbr.rel (%p12) target = $region8
    $region5: #{tpu_custom_call.1} parent=1 // loop_body
      %s16 = ssub.s32 %s11, 1
      %s17 = ssub.s32 %s11, 2
      %s24 = sadd.s32 1, %s19
      %p25 = scmp.ge.s32.totalorder %s24, 8
      %s26 = scalar_select %p25, 0, %s24
      %s27 = sadd.s32 1, %s18
      %s28 = scalar_select %p25, %s27, %s18
      %p29 = scmp.ge.s32.totalorder %s28, 1
      %s30 = scalar_select %p29, 0, %s28
      %s31 = smul.u32 %s18, 8
      %s32 = sadd.s32 %s31, %s19
      %s33 = smul.u32 %s30, 8
      %s34 = sadd.s32 %s33, %s26
      %s35 = ssub.s32 %s32, %s34
      %p36 = scmp.eq.s32.totalorder %s35, 0
      %s38 = sadd.s32 %s37, 1
      %s39 = scalar_select %p36, %s37, %s38
      %p42 = pneg %p36
      %p43 = scmp.eq.s32.totalorder %s11, 7
      %p44 = por %p42, %p43
      %p45 = scmp.ne.s32.totalorder %s37, %s40
      %p46 = scmp.eq.s32.totalorder %s11, 0
      %p47 = por %p45, %p46
      %p48 = scmp.ne.s32.totalorder %s37, %s40
      %p49 = scmp.eq.s32.totalorder %s16, 7
      %p50 = por %p48, %p49
      %p51 = scmp.ne.s32.totalorder %s40, %s41
      %p52 = scmp.eq.s32.totalorder %s16, 0
      %p53 = por %p51, %p52
      %p54 = scmp.ne.s32.totalorder %s40, %s41
      %p55 = scmp.eq.s32.totalorder %s17, 7
      %p56 = por %p54, %p55
      %p58 = scmp.ne.s32.totalorder %s41, %s57
      %p59 = scmp.eq.s32.totalorder %s17, 0
      %p60 = por %p58, %p59
      %s61 = ssub.s32 %s18, %s30
      %p62 = scmp.eq.s32.totalorder %s61, 0
      %s64 = sadd.s32 %s63, 1
      %s65 = scalar_select %p62, %s63, %s64
      %p68 = pneg %p62
      %p69 = scmp.eq.s32.totalorder %s11, 7
      %p70 = por %p68, %p69
      %p71 = scmp.ne.s32.totalorder %s63, %s66
      %p72 = scmp.eq.s32.totalorder %s11, 0
      %p73 = por %p71, %p72
      %p74 = scmp.ne.s32.totalorder %s63, %s66
      %p75 = scmp.eq.s32.totalorder %s16, 7
      %p76 = por %p74, %p75
      %p77 = scmp.ne.s32.totalorder %s66, %s67
      %p78 = scmp.eq.s32.totalorder %s16, 0
      %p79 = por %p77, %p78
      %p80 = scmp.ne.s32.totalorder %s66, %s67
      %p81 = scmp.eq.s32.totalorder %s17, 7
      %p82 = por %p80, %p81
      %p84 = scmp.ne.s32.totalorder %s67, %s83
      %p85 = scmp.eq.s32.totalorder %s17, 0
      %p86 = por %p84, %p85
      %p87 = scmp.le.s32.totalorder 1, %s11
      %p88 = scmp.lt.s32.totalorder %s11, 9
      %p89 = pnand %p87, %p88
      %p90 = pneg %p89
      // Predicated region
      $region9: #{tpu_custom_call.1} parent=5 // pred_check
        _
      $region10: #{tpu_custom_call.1} parent=5 // pred_check_branch
        %92 = sbr.rel (%p89) target = $region12
      $region11: #{tpu_custom_call.1} parent=5 // pred_region
        %s93 = ssub.s32 %s11, 1
      $region12: #{tpu_custom_call.1} parent=5 // pred_fallthru
        _
      %p94 = scmp.lt.s32.totalorder %s11, 8
      // Predicated region
      $region13: #{tpu_custom_call.1} parent=5 // pred_check
        %p95 = pneg %p94
      $region14: #{tpu_custom_call.1} parent=5 // pred_check_branch
        %97 = sbr.rel (%p95) target = $region16
      $region15: #{tpu_custom_call.1} parent=5 // pred_region
        // Predicated region
        $region17: #{tpu_custom_call.1} parent=15 // pred_check
          %p98 = pneg %p47
        $region18: #{tpu_custom_call.1} parent=15 // pred_check_branch
          %100 = sbr.rel (%p98) target = $region20
        $region19: #{tpu_custom_call.1} parent=15 // pred_region
          %s101 = sand.u32 %s37, 1
          %s102 = scalar_lea.sflag [#allocation5], %s101
          %s103 = sand.u32 %s37, 1
          %s104 = smul.addr %s103, 128
          %s105 = scalar_lea.vmem [#allocation4], %s104
          %s106 = smul.u32 %s18, 8
          %s107 = sadd.s32 %s106, %s19
          %s108 = smul.u32 8, %s107
          %s109 = ssub.s32 65, %s108
          %p110 = scmp.lt.s32.totalorder %s109, 8
          %s111 = scalar_select %p110, %s109, 8
          %s112 = smul.u32 128, %s111
          %s113 = smul.u32 %s112, 2
          %s115 = ssub.s32 2048, %s113
          %116 = vsyncadd %s102, %s115
          %p117 = scmp.ne.s32.totalorder 0, %s113
          %s118 = smul.addr %s108, 2
          %s119 = smul.addr %s118, 128
          %s120 = scalar_lea.hbm %s0, %s119
          %s121 = smul.u32 16, %s111
          %s122 = sshll.u32 %s105, 4
          %s123 = int_to_ptr.vmem [resolvable:$true] %s122
          %s124 = sshll.u32 %s121, 4
          %128 = dma.hbm_to_vmem [thread:$0]  (%p117), %s120, %s124, %s123, %s102, 256, 256, 16
        $region20: #{tpu_custom_call.1} parent=15 // pred_fallthru
          _
      $region16: #{tpu_custom_call.1} parent=5 // pred_fallthru
        _
      %p129 = scmp.le.s32.totalorder 1, %s11
      %p130 = scmp.lt.s32.totalorder %s11, 9
      %p131 = pnand %p129, %p130
      %p132 = pneg %p131
      // Predicated region
      $region21: #{tpu_custom_call.1} parent=5 // pred_check
        _
      $region22: #{tpu_custom_call.1} parent=5 // pred_check_branch
        %134 = sbr.rel (%p131) target = $region24
      $region23: #{tpu_custom_call.1} parent=5 // pred_region
        %s135 = ssub.s32 %s11, 1
        %s136 = sand.u32 %s40, 1
        %s137 = scalar_lea.sflag [#allocation5], %s136
        %s138 = sand.u32 %s40, 1
        %s139 = smul.addr %s138, 128
        %s140 = scalar_lea.vmem [#allocation4], %s139
        // Predicated region
        $region25: #{tpu_custom_call.1} parent=23 // pred_check
          %p141 = pneg %p53
        $region26: #{tpu_custom_call.1} parent=23 // pred_check_branch
          %143 = sbr.rel (%p141) target = $region28
        $region27: #{tpu_custom_call.1} parent=23 // pred_region
          %144 = dma.done %s137, 2048
        $region28: #{tpu_custom_call.1} parent=23 // pred_fallthru
          _
        %s145 = sand.u32 %s40, 1
        %s146 = scalar_lea.sflag [#allocation5], %s145
        %s147 = sand.u32 %s40, 1
        %s148 = smul.addr %s147, 128
        %s149 = scalar_lea.vmem [#allocation4], %s148
        %p150 = pneg %p53
        %p151 = pneg %p50
        %p152 = pneg %p79
        %p153 = pneg %p76
        %s154 = smul.u32 %s20, 8
        %s155 = sadd.s32 %s154, %s21
        %s156 = smul.u32 8, %s155
        %s157 = ssub.s32 65, %s156
        %p158 = scmp.lt.s32.totalorder %s157, 8
        %s159 = scalar_select %p158, %s157, 8
        %s160 = smul.u32 128, %s159
        %s161 = smul.u32 %s160, 2
        %p162 = scmp.eq.s32.totalorder %s21, 0
        // Predicated region
        $region29: #{tpu_custom_call.1} parent=23 // pred_check
          %p163 = pneg %p162
        $region30: #{tpu_custom_call.1} parent=23 // pred_check_branch
          %165 = sbr.rel (%p163) target = $region32
        $region31: #{tpu_custom_call.1} parent=23 // pred_region
          %166 = vst [vmem:[#allocation2] sm:$0xff] -3.4028235e+38
          %167 = vst [vmem:[#allocation2 + $0x8] sm:$0xff] -3.4028235e+38
          %168 = vst [vmem:[#allocation3] sm:$0xff] 0.0
          %169 = vst [vmem:[#allocation3 + $0x8] sm:$0xff] 0.0
        $region32: #{tpu_custom_call.1} parent=23 // pred_fallthru
          _
        %v170 = vld [vmem:[#allocation2] sm:$0xff]
        %v171 = vld [vmem:[#allocation2 + $0x8] sm:$0xff]
        %v172 = vld [vmem:[#allocation3] sm:$0xff]
        %v173 = vld [vmem:[#allocation3 + $0x8] sm:$0xff]
        %s174 = smul.u32 0, 2
        %s175 = smul.addr %s174, 8
        %s176 = scalar_lea.vmem %s140, %s175 [#allocation4]
        %v177 = vld [vmem:[%s176] sm:$0xff]
        %v178 = vld [vmem:[%s176 + $0x8] sm:$0xff]
        %v179 = vld [vmem:[%s176 + $0x10] sm:$0xff]
        %v180 = vld [vmem:[%s176 + $0x18] sm:$0xff]
        %v181 = vld [vmem:[%s176 + $0x20] sm:$0xff]
        %v182 = vld [vmem:[%s176 + $0x28] sm:$0xff]
        %v183 = vld [vmem:[%s176 + $0x30] sm:$0xff]
        %v184 = vld [vmem:[%s176 + $0x38] sm:$0xff]
        %v185 = vld [vmem:[%s176 + $0x40] sm:$0xff]
        %v186 = vld [vmem:[%s176 + $0x48] sm:$0xff]
        %v187 = vld [vmem:[%s176 + $0x50] sm:$0xff]
        %v188 = vld [vmem:[%s176 + $0x58] sm:$0xff]
        %v189 = vld [vmem:[%s176 + $0x60] sm:$0xff]
        %v190 = vld [vmem:[%s176 + $0x68] sm:$0xff]
        %v191 = vld [vmem:[%s176 + $0x70] sm:$0xff]
        %v192 = vld [vmem:[%s176 + $0x78] sm:$0xff]
        %v193 = vmax.f32 %v177, %v181
        %v194 = vmax.f32 %v179, %v183
        %v195 = vmax.f32 %v193, %v185
        %v196 = vmax.f32 %v194, %v187
        %v197 = vmax.f32 %v195, %v189
        %v198 = vmax.f32 %v196, %v191
        %v199 = vmax.f32 %v197, %v198
        %v200 = vmax.f32 %v178, %v182
        %v201 = vmax.f32 %v180, %v184
        %v202 = vmax.f32 %v200, %v186
        %v203 = vmax.f32 %v201, %v188
        %v204 = vmax.f32 %v202, %v190
        %v205 = vmax.f32 %v203, %v192
        %v206 = vmax.f32 %v204, %v205
        %v207 = vmax.f32 %v170, %v199
        %v208 = vmax.f32 %v171, %v206
        %v209 = vsub.f32 %v177, %v207
        %v210 = vsub.f32 %v178, %v208
        %v211 = vsub.f32 %v179, %v207
        %v212 = vsub.f32 %v180, %v208
        %v213 = vsub.f32 %v181, %v207
        %v214 = vsub.f32 %v182, %v208
        %v215 = vsub.f32 %v183, %v207
        %v216 = vsub.f32 %v184, %v208
        %v217 = vsub.f32 %v185, %v207
        %v218 = vsub.f32 %v186, %v208
        %v219 = vsub.f32 %v187, %v207
        %v220 = vsub.f32 %v188, %v208
        %v221 = vsub.f32 %v189, %v207
        %v222 = vsub.f32 %v190, %v208
        %v223 = vsub.f32 %v191, %v207
        %v224 = vsub.f32 %v192, %v208
        %v225 = vmul.f32 %v209, 1.442695
        %v226 = vpow.pop %v225
        %v227 = vmul.f32 %v210, 1.442695
        %v228 = vpow.pop %v227
        %v229 = vmul.f32 %v211, 1.442695
        %v230 = vpow.pop %v229
        %v231 = vmul.f32 %v212, 1.442695
        %v232 = vpow.pop %v231
        %v233 = vmul.f32 %v213, 1.442695
        %v234 = vpow.pop %v233
        %v235 = vmul.f32 %v214, 1.442695
        %v236 = vpow.pop %v235
        %v237 = vmul.f32 %v215, 1.442695
        %v238 = vpow.pop %v237
        %v239 = vmul.f32 %v216, 1.442695
        %v240 = vpow.pop %v239
        %v241 = vmul.f32 %v217, 1.442695
        %v242 = vpow.pop %v241
        %v243 = vmul.f32 %v218, 1.442695
        %v244 = vpow.pop %v243
        %v245 = vmul.f32 %v219, 1.442695
        %v246 = vpow.pop %v245
        %v247 = vmul.f32 %v220, 1.442695
        %v248 = vpow.pop %v247
        %v249 = vmul.f32 %v221, 1.442695
        %v250 = vpow.pop %v249
        %v251 = vmul.f32 %v222, 1.442695
        %v252 = vpow.pop %v251
        %v253 = vmul.f32 %v223, 1.442695
        %v254 = vpow.pop %v253
        %v255 = vmul.f32 %v224, 1.442695
        %v256 = vpow.pop %v255
        %v257 = vsub.f32 %v170, %v207
        %v258 = vsub.f32 %v171, %v208
        %v259 = vmul.f32 %v257, 1.442695
        %v260 = vpow.pop %v259
        %v261 = vmul.f32 %v258, 1.442695
        %v262 = vpow.pop %v261
        %v263 = vmul.f32 %v172, %v260
        %v264 = vmul.f32 %v173, %v262
        %v265 = vadd.f32 %v226, %v230
        %v266 = vadd.f32 %v265, %v234
        %v267 = vadd.f32 %v266, %v238
        %v268 = vadd.f32 %v267, %v242
        %v269 = vadd.f32 %v268, %v246
        %v270 = vadd.f32 %v269, %v250
        %v271 = vadd.f32 %v270, %v254
        %v272 = vadd.f32 %v228, %v232
        %v273 = vadd.f32 %v272, %v236
        %v274 = vadd.f32 %v273, %v240
        %v275 = vadd.f32 %v274, %v244
        %v276 = vadd.f32 %v275, %v248
        %v277 = vadd.f32 %v276, %v252
        %v278 = vadd.f32 %v277, %v256
        %v279 = vadd.f32 %v263, %v271
        %v280 = vadd.f32 %v264, %v278
        %281 = vst [vmem:[#allocation2] sm:$0xff] %v207
        %282 = vst [vmem:[#allocation2 + $0x8] sm:$0xff] %v208
        %283 = vst [vmem:[#allocation3] sm:$0xff] %v279
        %284 = vst [vmem:[#allocation3 + $0x8] sm:$0xff] %v280
        %p285 = scmp.eq.s32.totalorder %s21, 7
        // Predicated region
        $region33: #{tpu_custom_call.1} parent=23 // pred_check
          %p286 = pneg %p285
        $region34: #{tpu_custom_call.1} parent=23 // pred_check_branch
          %288 = sbr.rel (%p286) target = $region36
        $region35: #{tpu_custom_call.1} parent=23 // pred_region
          %v289 = vld [vmem:[#allocation2] sm:$0xff]
          %v290 = vld [vmem:[#allocation2 + $0x8] sm:$0xff]
          %v291 = vmax.f32 %v289, %v290
          %292 = vmax.xlane.f32.xlu0 %v291
          %v293 = vpop.xlane.xlu0 %292
          %v294 = vrot.slane %v293, 4
          %v295 = vmax.f32 %v293, %v294
          %v296 = vrot.slane %v295, 2
          %v297 = vmax.f32 %v295, %v296
          %v298 = vrot.slane %v297, 1
          %v299 = vmax.f32 %v297, %v298
          %s300 = vtos %v299
          %v301 = vstv %s300
          %v302 = vld [vmem:[#allocation3] sm:$0xff]
          %v303 = vld [vmem:[#allocation3 + $0x8] sm:$0xff]
          %v304 = vsub.f32 %v289, %v301
          %v305 = vsub.f32 %v290, %v301
          %v306 = vmul.f32 %v304, 1.442695
          %v307 = vpow.pop %v306
          %v308 = vmul.f32 %v305, 1.442695
          %v309 = vpow.pop %v308
          %v310 = vmul.f32 %v302, %v307
          %v311 = vmul.f32 %v303, %v309
          %v312 = vadd.f32 %v310, %v311
          %313 = vadd.xlane.f32.xlu0 %v312
          %v314 = vpop.xlane.xlu0 %313
          %v315 = vrot.slane %v314, 4
          %v316 = vadd.f32 %v314, %v315
          %v317 = vrot.slane %v316, 2
          %v318 = vadd.f32 %v316, %v317
          %v319 = vrot.slane %v318, 1
          %v320 = vadd.f32 %v318, %v319
          %s321 = vtos %v320
          %v322 = vstv %s321
          %v323 = vlog2.pop %v322
          %v324 = vmul.f32 %v323, 0.6931472
          %v325 = vadd.f32 %v301, %v324
          %326 = vst [vmem:[#allocation7] sm:$0xff] %v325
        $region36: #{tpu_custom_call.1} parent=23 // pred_fallthru
          _
        // Predicated region
        $region37: #{tpu_custom_call.1} parent=23 // pred_check
          %p327 = pneg %p76
        $region38: #{tpu_custom_call.1} parent=23 // pred_check_branch
          %329 = sbr.rel (%p327) target = $region40
        $region39: #{tpu_custom_call.1} parent=23 // pred_region
          %s331 = ssub.s32 128, 128
          %332 = vsyncadd [#allocation6], %s331
          %s333 = smul.addr %s20, 128
          %s334 = scalar_lea.hbm %s1, %s333
          %s336 = sshll.u32 [#allocation7], 4
          %s337 = int_to_ptr.vmem [resolvable:$true] %s336
          %339 = dma.vmem_to_hbm [thread:$0]  %s337, 128, %s334, [#allocation6]
        $region40: #{tpu_custom_call.1} parent=23 // pred_fallthru
          _
        // Predicated region
        $region41: #{tpu_custom_call.1} parent=23 // pred_check
          %p340 = pneg %p76
        $region42: #{tpu_custom_call.1} parent=23 // pred_check_branch
          %342 = sbr.rel (%p340) target = $region44
        $region43: #{tpu_custom_call.1} parent=23 // pred_region
          %343 = dma.done [#allocation6], 128
        $region44: #{tpu_custom_call.1} parent=23 // pred_fallthru
          _
      $region24: #{tpu_custom_call.1} parent=5 // pred_fallthru
        _
      %p344 = scmp.le.s32.totalorder 2, %s11
      // Predicated region
      $region45: #{tpu_custom_call.1} parent=5 // pred_check
        %p345 = pneg %p344
      $region46: #{tpu_custom_call.1} parent=5 // pred_check_branch
        %347 = sbr.rel (%p345) target = $region48
      $region47: #{tpu_custom_call.1} parent=5 // pred_region
        %s348 = ssub.s32 %s11, 2
      $region48: #{tpu_custom_call.1} parent=5 // pred_fallthru
        _
    $region6: #{tpu_custom_call.1} parent=1 // loop_footer
      %s15 = sadd.s32 1, %s11
    $region7: #{tpu_custom_call.1} parent=1 // loop_footer_branch
      %10 = sbr.rel target = $region3
    $region8: #{tpu_custom_call.1} parent=1 // loop_exit
      _
    %349 = vsyncpa [#allocation5], 1
    %s350 = scalar_lea.sflag [#allocation5], 1
    %351 = vsyncpa %s350, 1
    %352 = vsyncpa [#allocation6], 1
    %s353 = scalar_lea.sflag [#allocation6], 1
    %354 = vsyncpa %s353, 1

</llo_original>
